<compile_context>
chip_gen: v6e
topology: v6e:2x2x1
jax: 0.10.0
libtpu: 0.0.40
codegen_flags: <defaults>
</compile_context>

<pallas_src>
import functools

import jax
import jax.numpy as jnp
from jax.experimental import pallas as pl
from jax.experimental.pallas import tpu as pltpu


def _round_up(a, b):
    return ((a + b - 1) // b) * b


# ---------------------------------------------------------------------------
# Pass 1: conv-as-matmul + bias + LeakyReLU, per-channel sum / sum-of-squares
# ---------------------------------------------------------------------------
def _conv_lrelu_stats_kernel(patches_ref, w_ref, b_ref,
                             y_ref, sum_ref, sumsq_ref,
                             *, neg_slope, valid_m):
    i = pl.program_id(0)
    tile_m = y_ref.shape[0]

    @pl.when(i == 0)
    def _():
        sum_ref[...] = jnp.zeros_like(sum_ref)
        sumsq_ref[...] = jnp.zeros_like(sumsq_ref)

    # Conv as MXU matmul, f32 accumulation.
    y = jnp.dot(patches_ref[...], w_ref[...],
                preferred_element_type=jnp.float32)
    y = y + b_ref[...]                       # conv bias
    y = jnp.where(y > 0, y, neg_slope * y)   # LeakyReLU(0.01)
    y_ref[...] = y                           # pre-BN activations (re-read in pass 2)

    # Mask rows that are only zero-padding of M so BN statistics stay exact.
    rows = jax.lax.broadcasted_iota(jnp.int32, y.shape, 0) + i * tile_m
    ym = jnp.where(rows < valid_m, y, 0.0)
    sum_ref[...] += jnp.sum(ym, axis=0, keepdims=True)
    sumsq_ref[...] += jnp.sum(ym * ym, axis=0, keepdims=True)


# ---------------------------------------------------------------------------
# Pass 2: apply folded BatchNorm (y * scale + shift)
# ---------------------------------------------------------------------------
def _bn_apply_kernel(y_ref, scale_ref, shift_ref, o_ref):
    o_ref[...] = (y_ref[...] * scale_ref[...] + shift_ref[...]).astype(o_ref.dtype)


def in_block_forward(x, weight, bias, gamma, beta, *, pad=1, eps=1e-5,
                     neg_slope=0.01, tile_m=2048):
    """x: [N, C_in, H, W] (NCHW). weight: [C_out, C_in, KH, KW]. Returns NCHW."""
    n, c_in, h, w = x.shape
    c_out, _, kh, kw = weight.shape
    oh = h + 2 * pad - kh + 1
    ow = w + 2 * pad - kw + 1
    assert oh > 0 and ow > 0, "spatial dims too small for kernel/padding"

    m = n * oh * ow
    k = c_in * kh * kw

    k_pad = _round_up(k, 128)            # lane-aligned K
    c_pad = _round_up(c_out, 128)        # lane-dense output channels
    tm = min(tile_m, _round_up(m, 8))    # row tile (multiple of 8)
    m_pad = _round_up(m, tm)
    n_tiles = m_pad // tm

    # ---- glue: im2col (XLA), feature dim ordered (c_in, kh, kw) ----
    patches = jax.lax.conv_general_dilated_patches(
        x, filter_shape=(kh, kw), window_strides=(1, 1),
        padding=((pad, pad), (pad, pad)),
        dimension_numbers=("NCHW", "OIHW", "NHWC"))
    patches = patches.reshape(m, k)
    patches = jnp.pad(patches, ((0, m_pad - m), (0, k_pad - k)))

    w_mat = jnp.pad(weight.reshape(c_out, k).T,
                    ((0, k_pad - k), (0, c_pad - c_out)))        # [K_pad, C_pad]
    b_row = jnp.pad(bias.reshape(1, c_out), ((0, 0), (0, c_pad - c_out)))

    flops1 = 2 * m_pad * k_pad * c_pad + 6 * m_pad * c_pad
    bytes1 = 4 * (m_pad * k_pad + k_pad * c_pad + c_pad + m_pad * c_pad + 2 * c_pad)

    y_pre, sums, sumsqs = pl.pallas_call(
        functools.partial(_conv_lrelu_stats_kernel,
                          neg_slope=neg_slope, valid_m=m),
        out_shape=(jax.ShapeDtypeStruct((m_pad, c_pad), jnp.float32),
                   jax.ShapeDtypeStruct((1, c_pad), jnp.float32),
                   jax.ShapeDtypeStruct((1, c_pad), jnp.float32)),
        grid_spec=pltpu.PrefetchScalarGridSpec(
            num_scalar_prefetch=0,
            grid=(n_tiles,),
            in_specs=[
                pl.BlockSpec((tm, k_pad), lambda i: (i, 0)),      # patches tile
                pl.BlockSpec((k_pad, c_pad), lambda i: (0, 0)),   # resident weight
                pl.BlockSpec((1, c_pad), lambda i: (0, 0)),       # bias
            ],
            out_specs=(
                pl.BlockSpec((tm, c_pad), lambda i: (i, 0)),      # pre-BN activations
                pl.BlockSpec((1, c_pad), lambda i: (0, 0)),       # resident sum acc
                pl.BlockSpec((1, c_pad), lambda i: (0, 0)),       # resident sumsq acc
            )),
        compiler_params=pltpu.CompilerParams(
            # M axis must be "arbitrary": the sum/sumsq output blocks are
            # revisited (accumulated) across it.
            dimension_semantics=("arbitrary",),
            vmem_limit_bytes=32 * 1024 * 1024),
        cost_estimate=pl.CostEstimate(
            flops=flops1, transcendentals=0, bytes_accessed=bytes1),
    )(patches, w_mat, b_row)

    # ---- fold BatchNorm into per-channel scale/shift (tiny, plain JAX) ----
    mean = sums / m
    var = jnp.maximum(sumsqs / m - mean * mean, 0.0)   # biased variance, guarded
    g_row = jnp.pad(gamma.reshape(1, c_out), ((0, 0), (0, c_pad - c_out)))
    be_row = jnp.pad(beta.reshape(1, c_out), ((0, 0), (0, c_pad - c_out)))
    scale = g_row * jax.lax.rsqrt(var + eps)
    shift = be_row - mean * scale

    out_flat = pl.pallas_call(
        _bn_apply_kernel,
        out_shape=jax.ShapeDtypeStruct((m_pad, c_pad), x.dtype),
        grid_spec=pltpu.PrefetchScalarGridSpec(
            num_scalar_prefetch=0,
            grid=(n_tiles,),
            in_specs=[
                pl.BlockSpec((tm, c_pad), lambda i: (i, 0)),
                pl.BlockSpec((1, c_pad), lambda i: (0, 0)),
                pl.BlockSpec((1, c_pad), lambda i: (0, 0)),
            ],
            out_specs=pl.BlockSpec((tm, c_pad), lambda i: (i, 0))),
        compiler_params=pltpu.CompilerParams(
            dimension_semantics=("parallel",),   # independent tiles -> megacore on v7x
            vmem_limit_bytes=32 * 1024 * 1024),
        cost_estimate=pl.CostEstimate(
            flops=2 * m_pad * c_pad, transcendentals=0,
            bytes_accessed=4 * (2 * m_pad * c_pad + 2 * c_pad)),
    )(y_pre, scale, shift)

    # drop M/C padding, [M, C_out] -> [N, OH, OW, C_out] -> NCHW
    return out_flat[:m, :c_out].reshape(n, oh, ow, c_out).transpose(0, 3, 1, 2)


# ---------------------------------------------------------------------------
# Pure-JAX reference of the module forward (for a sanity check)
# ---------------------------------------------------------------------------
def _reference_forward(x, weight, bias, gamma, beta, *, pad=1, eps=1e-5,
                       neg_slope=0.01):
    y = jax.lax.conv_general_dilated(
        x, weight, window_strides=(1, 1),
        padding=((pad, pad), (pad, pad)),
        dimension_numbers=("NCHW", "OIHW", "NCHW"),
        precision=jax.lax.Precision.HIGHEST)
    y = y + bias[None, :, None, None]
    y = jnp.where(y > 0, y, neg_slope * y)
    mean = jnp.mean(y, axis=(0, 2, 3), keepdims=True)
    var = jnp.mean((y - mean) ** 2, axis=(0, 2, 3), keepdims=True)
    y = (y - mean) * jax.lax.rsqrt(var + eps)
    return y * gamma[None, :, None, None] + beta[None, :, None, None]


if __name__ == "__main__":
    # Module config (small, consistent with In(in_ch, out_ch, kernel=7, pad=1))
    in_ch, out_ch = 4, 8
    kh = kw = 7
    pad = 1
    N, H, W = 2, 16, 16

    key = jax.random.PRNGKey(0)
    k_x, k_w, k_b = jax.random.split(key, 3)

    x = jax.random.normal(k_x, (N, in_ch, H, W), dtype=jnp.float32)

    # Deterministic parameter init (synthetic; mirrors shapes in __init__).
    fan_in = in_ch * kh * kw
    weight = jax.random.normal(k_w, (out_ch, in_ch, kh, kw),
                               dtype=jnp.float32) * (1.0 / fan_in) ** 0.5
    bias = jax.random.normal(k_b, (out_ch,), dtype=jnp.float32) * 0.01
    gamma = jnp.ones((out_ch,), dtype=jnp.float32)   # BatchNorm weight init
    beta = jnp.zeros((out_ch,), dtype=jnp.float32)   # BatchNorm bias init

    fwd = jax.jit(functools.partial(in_block_forward, pad=pad))
    out = jax.block_until_ready(fwd(x, weight, bias, gamma, beta))

    expected_shape = (N, out_ch, H + 2 * pad - kh + 1, W + 2 * pad - kw + 1)
    assert out.shape == expected_shape, (out.shape, expected_shape)

    # Correctness check against the pure-JAX reference (tolerance is loose
    # enough to absorb MXU f32-pass precision differences, tight enough to
    # catch any layout / ordering / BN-formula bug).
    ref = _reference_forward(x, weight, bias, gamma, beta, pad=pad)
    max_err = float(jnp.max(jnp.abs(out - ref)))
    assert max_err < 5e-2, f"mismatch vs reference: max_err={max_err}"

    print("KERNEL_OK")
</pallas_src>

<mosaic_0001>
module attributes {stable_mosaic.version = 11 : i64} {
  func.func @_conv_lrelu_stats_kernel(%arg0: i32, %arg1: memref<288x256xf32, #tpu.memory_space<vmem>>, %arg2: memref<256x128xf32, #tpu.memory_space<vmem>>, %arg3: memref<1x128xf32, #tpu.memory_space<vmem>>, %arg4: memref<288x128xf32, #tpu.memory_space<vmem>>, %arg5: memref<1x128xf32, #tpu.memory_space<vmem>>, %arg6: memref<1x128xf32, #tpu.memory_space<vmem>>) attributes {dimension_semantics = [#tpu.dimension_semantics<arbitrary>], iteration_bounds = array<i64: 1>, scalar_prefetch = 0 : i64, scratch_operands = 0 : i64, tpu.core_type = #tpu.core_type<tc>, window_params = [{transform_indices = @transform_0, window_bounds = array<i64: 288, 256>}, {pipeline_mode = #tpu.pipeline_mode<synchronous>, transform_indices = @transform_1, window_bounds = array<i64: 256, 128>}, {pipeline_mode = #tpu.pipeline_mode<synchronous>, transform_indices = @transform_2, window_bounds = array<i64: 1, 128>}, {transform_indices = @transform_3, window_bounds = array<i64: 288, 128>}, {pipeline_mode = #tpu.pipeline_mode<synchronous>, transform_indices = @transform_4, window_bounds = array<i64: 1, 128>}, {pipeline_mode = #tpu.pipeline_mode<synchronous>, transform_indices = @transform_5, window_bounds = array<i64: 1, 128>}]} {
    %c0_i32 = arith.constant 0 : i32
    %0 = arith.cmpi eq, %arg0, %c0_i32 : i32
    %1 = arith.extui %0 : i1 to i32
    %c0_i32_0 = arith.constant 0 : i32
    %2 = arith.cmpi ne, %1, %c0_i32_0 : i32
    scf.if %2 {
      %cst_22 = arith.constant 0.000000e+00 : f32
      %34 = vector.broadcast %cst_22 : f32 to vector<1x128xf32>
      %c0_23 = arith.constant 0 : index
      %c0_24 = arith.constant 0 : index
      %35 = vector.load %arg5[%c0_23, %c0_24] : memref<1x128xf32, #tpu.memory_space<vmem>>, vector<1x128xf32>
      tpu.vector_store %arg5[%c0_23, %c0_24], %34 {strides = array<i32>} : memref<1x128xf32, #tpu.memory_space<vmem>>, vector<1x128xf32>,
      %cst_25 = arith.constant 0.000000e+00 : f32
      %36 = vector.broadcast %cst_25 : f32 to vector<1x128xf32>
      %c0_26 = arith.constant 0 : index
      %c0_27 = arith.constant 0 : index
      %37 = vector.load %arg6[%c0_26, %c0_27] : memref<1x128xf32, #tpu.memory_space<vmem>>, vector<1x128xf32>
      tpu.vector_store %arg6[%c0_26, %c0_27], %36 {strides = array<i32>} : memref<1x128xf32, #tpu.memory_space<vmem>>, vector<1x128xf32>,
    } else {
    }
    %c0 = arith.constant 0 : index
    %c0_1 = arith.constant 0 : index
    %3 = vector.load %arg1[%c0, %c0_1] : memref<288x256xf32, #tpu.memory_space<vmem>>, vector<288x256xf32>
    %c0_2 = arith.constant 0 : index
    %c0_3 = arith.constant 0 : index
    %4 = vector.load %arg2[%c0_2, %c0_3] : memref<256x128xf32, #tpu.memory_space<vmem>>, vector<256x128xf32>
    %cst = arith.constant dense<0.000000e+00> : vector<288x128xf32>
    %5 = tpu.matmul %3, %4, %cst {dimension_numbers = #tpu.dot_dimension_numbers<[1], [0], [0], [1], [0, 0, 1, 1], [], []>} : vector<288x256xf32>, vector<256x128xf32>, vector<288x128xf32> -> vector<288x128xf32>
    %c0_4 = arith.constant 0 : index
    %c0_5 = arith.constant 0 : index
    %6 = vector.load %arg3[%c0_4, %c0_5] : memref<1x128xf32, #tpu.memory_space<vmem>>, vector<1x128xf32>
    %7 = vector.broadcast %6 : vector<1x128xf32> to vector<288x128xf32>
    %8 = arith.addf %5, %7 : vector<288x128xf32>
    %cst_6 = arith.constant 0.000000e+00 : f32
    %9 = vector.broadcast %cst_6 : f32 to vector<288x128xf32>
    %10 = arith.cmpf ogt, %8, %9 : vector<288x128xf32>
    %cst_7 = arith.constant 0.00999999977 : f32
    %11 = vector.broadcast %cst_7 : f32 to vector<288x128xf32>
    %12 = arith.mulf %11, %8 : vector<288x128xf32>
    %13 = arith.select %10, %8, %12 : vector<288x128xi1>, vector<288x128xf32>
    %c0_8 = arith.constant 0 : index
    %c0_9 = arith.constant 0 : index
    %14 = vector.load %arg4[%c0_8, %c0_9] : memref<288x128xf32, #tpu.memory_space<vmem>>, vector<288x128xf32>
    tpu.vector_store %arg4[%c0_8, %c0_9], %13 {strides = array<i32>} : memref<288x128xf32, #tpu.memory_space<vmem>>, vector<288x128xf32>,
    %15 = tpu.iota {dimensions = array<i32: 0>} : vector<288x128xi32>
    %c288_i32 = arith.constant 288 : i32
    %16 = arith.muli %arg0, %c288_i32 : i32
    %17 = vector.broadcast %16 : i32 to vector<288x128xi32>
    %18 = arith.addi %15, %17 : vector<288x128xi32>
    %c288_i32_10 = arith.constant 288 : i32
    %19 = vector.broadcast %c288_i32_10 : i32 to vector<288x128xi32>
    %20 = arith.cmpi slt, %18, %19 : vector<288x128xi32>
    %cst_11 = arith.constant 0.000000e+00 : f32
    %21 = vector.broadcast %cst_11 : f32 to vector<288x128xf32>
    %22 = arith.select %20, %13, %21 : vector<288x128xi1>, vector<288x128xf32>
    %c0_12 = arith.constant 0 : index
    %c0_13 = arith.constant 0 : index
    %23 = vector.load %arg5[%c0_12, %c0_13] : memref<1x128xf32, #tpu.memory_space<vmem>>, vector<1x128xf32>
    %cst_14 = arith.constant dense<0.000000e+00> : vector<128xf32>
    %24 = vector.multi_reduction <add>, %22, %cst_14 [0] : vector<288x128xf32> to vector<128xf32>
    %25 = vector.shape_cast %24 : vector<128xf32> to vector<1x128xf32>
    %26 = arith.addf %23, %25 : vector<1x128xf32>
    %c0_15 = arith.constant 0 : index
    %c0_16 = arith.constant 0 : index
    %27 = vector.load %arg5[%c0_15, %c0_16] : memref<1x128xf32, #tpu.memory_space<vmem>>, vector<1x128xf32>
    tpu.vector_store %arg5[%c0_15, %c0_16], %26 {strides = array<i32>} : memref<1x128xf32, #tpu.memory_space<vmem>>, vector<1x128xf32>,
    %c0_17 = arith.constant 0 : index
    %c0_18 = arith.constant 0 : index
    %28 = vector.load %arg6[%c0_17, %c0_18] : memref<1x128xf32, #tpu.memory_space<vmem>>, vector<1x128xf32>
    %29 = arith.mulf %22, %22 : vector<288x128xf32>
    %cst_19 = arith.constant dense<0.000000e+00> : vector<128xf32>
    %30 = vector.multi_reduction <add>, %29, %cst_19 [0] : vector<288x128xf32> to vector<128xf32>
    %31 = vector.shape_cast %30 : vector<128xf32> to vector<1x128xf32>
    %32 = arith.addf %28, %31 : vector<1x128xf32>
    %c0_20 = arith.constant 0 : index
    %c0_21 = arith.constant 0 : index
    %33 = vector.load %arg6[%c0_20, %c0_21] : memref<1x128xf32, #tpu.memory_space<vmem>>, vector<1x128xf32>
    tpu.vector_store %arg6[%c0_20, %c0_21], %32 {strides = array<i32>} : memref<1x128xf32, #tpu.memory_space<vmem>>, vector<1x128xf32>,
    return
  }
  func.func @transform_0(%arg0: i32) -> (i32, i32) {
    %c0_i32 = arith.constant 0 : i32
    %c0_i32_0 = arith.constant 0 : i32
    return %arg0, %c0_i32 : i32, i32
  }
  func.func @transform_1(%arg0: i32) -> (i32, i32) {
    %c0_i32 = arith.constant 0 : i32
    %c0_i32_0 = arith.constant 0 : i32
    %c0_i32_1 = arith.constant 0 : i32
    return %c0_i32, %c0_i32_0 : i32, i32
  }
  func.func @transform_2(%arg0: i32) -> (i32, i32) {
    %c0_i32 = arith.constant 0 : i32
    %c0_i32_0 = arith.constant 0 : i32
    %c0_i32_1 = arith.constant 0 : i32
    return %c0_i32, %c0_i32_0 : i32, i32
  }
  func.func @transform_3(%arg0: i32) -> (i32, i32) {
    %c0_i32 = arith.constant 0 : i32
    %c0_i32_0 = arith.constant 0 : i32
    return %arg0, %c0_i32 : i32, i32
  }
  func.func @transform_4(%arg0: i32) -> (i32, i32) {
    %c0_i32 = arith.constant 0 : i32
    %c0_i32_0 = arith.constant 0 : i32
    %c0_i32_1 = arith.constant 0 : i32
    return %c0_i32, %c0_i32_0 : i32, i32
  }
  func.func @transform_5(%arg0: i32) -> (i32, i32) {
    %c0_i32 = arith.constant 0 : i32
    %c0_i32_0 = arith.constant 0 : i32
    %c0_i32_1 = arith.constant 0 : i32
    return %c0_i32, %c0_i32_0 : i32, i32
  }
}

module attributes {stable_mosaic.version = 11 : i64} {
  func.func @_bn_apply_kernel(%arg0: i32, %arg1: memref<288x128xf32, #tpu.memory_space<vmem>>, %arg2: memref<1x128xf32, #tpu.memory_space<vmem>>, %arg3: memref<1x128xf32, #tpu.memory_space<vmem>>, %arg4: memref<288x128xf32, #tpu.memory_space<vmem>>) attributes {dimension_semantics = [#tpu.dimension_semantics<parallel>], iteration_bounds = array<i64: 1>, scalar_prefetch = 0 : i64, scratch_operands = 0 : i64, tpu.core_type = #tpu.core_type<tc>, window_params = [{transform_indices = @transform_0, window_bounds = array<i64: 288, 128>}, {pipeline_mode = #tpu.pipeline_mode<synchronous>, transform_indices = @transform_1, window_bounds = array<i64: 1, 128>}, {pipeline_mode = #tpu.pipeline_mode<synchronous>, transform_indices = @transform_2, window_bounds = array<i64: 1, 128>}, {transform_indices = @transform_3, window_bounds = array<i64: 288, 128>}]} {
    %c0 = arith.constant 0 : index
    %c0_0 = arith.constant 0 : index
    %0 = vector.load %arg1[%c0, %c0_0] : memref<288x128xf32, #tpu.memory_space<vmem>>, vector<288x128xf32>
    %c0_1 = arith.constant 0 : index
    %c0_2 = arith.constant 0 : index
    %1 = vector.load %arg2[%c0_1, %c0_2] : memref<1x128xf32, #tpu.memory_space<vmem>>, vector<1x128xf32>
    %2 = vector.broadcast %1 : vector<1x128xf32> to vector<288x128xf32>
    %3 = arith.mulf %0, %2 : vector<288x128xf32>
    %c0_3 = arith.constant 0 : index
    %c0_4 = arith.constant 0 : index
    %4 = vector.load %arg3[%c0_3, %c0_4] : memref<1x128xf32, #tpu.memory_space<vmem>>, vector<1x128xf32>
    %5 = vector.broadcast %4 : vector<1x128xf32> to vector<288x128xf32>
    %6 = arith.addf %3, %5 : vector<288x128xf32>
    %c0_5 = arith.constant 0 : index
    %c0_6 = arith.constant 0 : index
    %7 = vector.load %arg4[%c0_5, %c0_6] : memref<288x128xf32, #tpu.memory_space<vmem>>, vector<288x128xf32>
    tpu.vector_store %arg4[%c0_5, %c0_6], %6 {strides = array<i32>} : memref<288x128xf32, #tpu.memory_space<vmem>>, vector<288x128xf32>,
    return
  }
  func.func @transform_0(%arg0: i32) -> (i32, i32) {
    %c0_i32 = arith.constant 0 : i32
    %c0_i32_0 = arith.constant 0 : i32
    return %arg0, %c0_i32 : i32, i32
  }
  func.func @transform_1(%arg0: i32) -> (i32, i32) {
    %c0_i32 = arith.constant 0 : i32
    %c0_i32_0 = arith.constant 0 : i32
    %c0_i32_1 = arith.constant 0 : i32
    return %c0_i32, %c0_i32_0 : i32, i32
  }
  func.func @transform_2(%arg0: i32) -> (i32, i32) {
    %c0_i32 = arith.constant 0 : i32
    %c0_i32_0 = arith.constant 0 : i32
    %c0_i32_1 = arith.constant 0 : i32
    return %c0_i32, %c0_i32_0 : i32, i32
  }
  func.func @transform_3(%arg0: i32) -> (i32, i32) {
    %c0_i32 = arith.constant 0 : i32
    %c0_i32_0 = arith.constant 0 : i32
    return %arg0, %c0_i32 : i32, i32
  }
}

</mosaic_0001>

<llo_original>
// kernel: in_block_forward.3
$region0: #{in_block_forward.3}
  #allocation0 [shape = 'u32[]', space=smem, size = 0x4, offset = 0x4, fixed_abs, tag = 'smem constant byte address 0x4 - core index']
  #allocation1 [shape = 'u32[144,128]{1,0:T(1,128)}', space=vmem, size = 0x12000, scoped, tag = 'internal scratch']
  %s0 = inlined_call_operand.vmem [shape: f32[288,128], index: 0, kind: input, shape index: {}]
  %s1 = inlined_call_operand.vmem [shape: f32[1,128], index: 1, kind: input, shape index: {}]
  %s2 = inlined_call_operand.vmem [shape: f32[1,128], index: 2, kind: input, shape index: {}]
  %s3 = inlined_call_operand.vmem [shape: f32[288,128], index: 3, kind: output, shape index: {}]
  %s4 = sld [smem:[#allocation0]]
  $region22: #{in_block_forward.3} parent=0
    _
  %s6 = ssub.s32 1, %s4
  %s7 = scalar_select 0, %s6, %s4
  // Predicated region
  $region2: #{in_block_forward.3} parent=0 // pred_check
    _
  $region3: #{in_block_forward.3} parent=0 // pred_check_branch
    %9 = sbr.rel (0) target = $region5
  $region4: #{in_block_forward.3} parent=0 // pred_region
    _
  $region5: #{in_block_forward.3} parent=0 // pred_fallthru
    _
  // Predicated region
  $region6: #{in_block_forward.3} parent=0 // pred_check
    _
  $region7: #{in_block_forward.3} parent=0 // pred_check_branch
    %11 = sbr.rel (0) target = $region9
  $region8: #{in_block_forward.3} parent=0 // pred_region
    _
  $region9: #{in_block_forward.3} parent=0 // pred_fallthru
    _
  // Predicated region
  $region10: #{in_block_forward.3} parent=0 // pred_check
    _
  $region11: #{in_block_forward.3} parent=0 // pred_check_branch
    %13 = sbr.rel (0) target = $region13
  $region12: #{in_block_forward.3} parent=0 // pred_region
    _
  $region13: #{in_block_forward.3} parent=0 // pred_fallthru
    _
  %v14 = vld [vmem:[%s0] sm:$0xff]
  %v15 = vld [vmem:[%s0 + $0x8] sm:$0xff]
  %v16 = vld [vmem:[%s0 + $0x10] sm:$0xff]
  %v17 = vld [vmem:[%s0 + $0x18] sm:$0xff]
  %v18 = vld [vmem:[%s0 + $0x20] sm:$0xff]
  %v19 = vld [vmem:[%s0 + $0x28] sm:$0xff]
  %v20 = vld [vmem:[%s0 + $0x30] sm:$0xff]
  %v21 = vld [vmem:[%s0 + $0x38] sm:$0xff]
  %v22 = vld [vmem:[%s0 + $0x40] sm:$0xff]
  %v23 = vld [vmem:[%s0 + $0x48] sm:$0xff]
  %v24 = vld [vmem:[%s0 + $0x50] sm:$0xff]
  %v25 = vld [vmem:[%s0 + $0x58] sm:$0xff]
  %v26 = vld [vmem:[%s0 + $0x60] sm:$0xff]
  %v27 = vld [vmem:[%s0 + $0x68] sm:$0xff]
  %v28 = vld [vmem:[%s0 + $0x70] sm:$0xff]
  %v29 = vld [vmem:[%s0 + $0x78] sm:$0xff]
  %v30 = vld [vmem:[%s0 + $0x80] sm:$0xff]
  %v31 = vld [vmem:[%s0 + $0x88] sm:$0xff]
  %v32 = vld [vmem:[%s0 + $0x90] sm:$0xff]
  %v33 = vld [vmem:[%s0 + $0x98] sm:$0xff]
  %v34 = vld [vmem:[%s0 + $0xa0] sm:$0xff]
  %v35 = vld [vmem:[%s0 + $0xa8] sm:$0xff]
  %v36 = vld [vmem:[%s0 + $0xb0] sm:$0xff]
  %v37 = vld [vmem:[%s0 + $0xb8] sm:$0xff]
  %v38 = vld [vmem:[%s0 + $0xc0] sm:$0xff]
  %v39 = vld [vmem:[%s0 + $0xc8] sm:$0xff]
  %v40 = vld [vmem:[%s0 + $0xd0] sm:$0xff]
  %v41 = vld [vmem:[%s0 + $0xd8] sm:$0xff]
  %v42 = vld [vmem:[%s0 + $0xe0] sm:$0xff]
  %v43 = vld [vmem:[%s0 + $0xe8] sm:$0xff]
  %v44 = vld [vmem:[%s0 + $0xf0] sm:$0xff]
  %v45 = vld [vmem:[%s0 + $0xf8] sm:$0xff]
  %v46 = vld [vmem:[%s0 + $0x100] sm:$0xff]
  %v47 = vld [vmem:[%s0 + $0x108] sm:$0xff]
  %v48 = vld [vmem:[%s0 + $0x110] sm:$0xff]
  %v49 = vld [vmem:[%s0 + $0x118] sm:$0xff]
  %v50 = vld [vmem:[%s1] sm:$0x1]
  %v52 = vlaneseq
  %v53 = vshrl.u32 %v52, 7
  %v54 = vsub.s32 0, %v53
  %v55 = vrot.slane %v50, %v54
  %v57 = vmul.f32 %v14, %v55
  %v58 = vmul.f32 %v15, %v55
  %v59 = vmul.f32 %v16, %v55
  %v60 = vmul.f32 %v17, %v55
  %v61 = vmul.f32 %v18, %v55
  %v62 = vmul.f32 %v19, %v55
  %v63 = vmul.f32 %v20, %v55
  %v64 = vmul.f32 %v21, %v55
  %v65 = vmul.f32 %v22, %v55
  %v66 = vmul.f32 %v23, %v55
  %v67 = vmul.f32 %v24, %v55
  %v68 = vmul.f32 %v25, %v55
  %v69 = vmul.f32 %v26, %v55
  %v70 = vmul.f32 %v27, %v55
  %v71 = vmul.f32 %v28, %v55
  %v72 = vmul.f32 %v29, %v55
  %v73 = vmul.f32 %v30, %v55
  %v74 = vmul.f32 %v31, %v55
  %v75 = vmul.f32 %v32, %v55
  %v76 = vmul.f32 %v33, %v55
  %v77 = vmul.f32 %v34, %v55
  %v78 = vmul.f32 %v35, %v55
  %v79 = vmul.f32 %v36, %v55
  %v80 = vmul.f32 %v37, %v55
  %v81 = vmul.f32 %v38, %v55
  %v82 = vmul.f32 %v39, %v55
  %v83 = vmul.f32 %v40, %v55
  %v84 = vmul.f32 %v41, %v55
  %v85 = vmul.f32 %v42, %v55
  %v86 = vmul.f32 %v43, %v55
  %v87 = vmul.f32 %v44, %v55
  %v88 = vmul.f32 %v45, %v55
  %v89 = vmul.f32 %v46, %v55
  %v90 = vmul.f32 %v47, %v55
  %v91 = vmul.f32 %v48, %v55
  %v92 = vmul.f32 %v49, %v55
  %v93 = vld [vmem:[%s2] sm:$0x1]
  %v95 = vlaneseq
  %v96 = vshrl.u32 %v95, 7
  %v97 = vsub.s32 0, %v96
  %v98 = vrot.slane %v93, %v97
  %v100 = vadd.f32 %v57, %v98
  %v101 = vadd.f32 %v58, %v98
  %v102 = vadd.f32 %v59, %v98
  %v103 = vadd.f32 %v60, %v98
  %v104 = vadd.f32 %v61, %v98
  %v105 = vadd.f32 %v62, %v98
  %v106 = vadd.f32 %v63, %v98
  %v107 = vadd.f32 %v64, %v98
  %v108 = vadd.f32 %v65, %v98
  %v109 = vadd.f32 %v66, %v98
  %v110 = vadd.f32 %v67, %v98
  %v111 = vadd.f32 %v68, %v98
  %v112 = vadd.f32 %v69, %v98
  %v113 = vadd.f32 %v70, %v98
  %v114 = vadd.f32 %v71, %v98
  %v115 = vadd.f32 %v72, %v98
  %v116 = vadd.f32 %v73, %v98
  %v117 = vadd.f32 %v74, %v98
  %v118 = vadd.f32 %v75, %v98
  %v119 = vadd.f32 %v76, %v98
  %v120 = vadd.f32 %v77, %v98
  %v121 = vadd.f32 %v78, %v98
  %v122 = vadd.f32 %v79, %v98
  %v123 = vadd.f32 %v80, %v98
  %v124 = vadd.f32 %v81, %v98
  %v125 = vadd.f32 %v82, %v98
  %v126 = vadd.f32 %v83, %v98
  %v127 = vadd.f32 %v84, %v98
  %v128 = vadd.f32 %v85, %v98
  %v129 = vadd.f32 %v86, %v98
  %v130 = vadd.f32 %v87, %v98
  %v131 = vadd.f32 %v88, %v98
  %v132 = vadd.f32 %v89, %v98
  %v133 = vadd.f32 %v90, %v98
  %v134 = vadd.f32 %v91, %v98
  %v135 = vadd.f32 %v92, %v98
  %136 = vst [vmem:[%s3] sm:$0xff] %v100
  %137 = vst [vmem:[%s3 + $0x8] sm:$0xff] %v101
  %138 = vst [vmem:[%s3 + $0x10] sm:$0xff] %v102
  %139 = vst [vmem:[%s3 + $0x18] sm:$0xff] %v103
  %140 = vst [vmem:[%s3 + $0x20] sm:$0xff] %v104
  %141 = vst [vmem:[%s3 + $0x28] sm:$0xff] %v105
  %142 = vst [vmem:[%s3 + $0x30] sm:$0xff] %v106
  %143 = vst [vmem:[%s3 + $0x38] sm:$0xff] %v107
  %144 = vst [vmem:[%s3 + $0x40] sm:$0xff] %v108
  %145 = vst [vmem:[%s3 + $0x48] sm:$0xff] %v109
  %146 = vst [vmem:[%s3 + $0x50] sm:$0xff] %v110
  %147 = vst [vmem:[%s3 + $0x58] sm:$0xff] %v111
  %148 = vst [vmem:[%s3 + $0x60] sm:$0xff] %v112
  %149 = vst [vmem:[%s3 + $0x68] sm:$0xff] %v113
  %150 = vst [vmem:[%s3 + $0x70] sm:$0xff] %v114
  %151 = vst [vmem:[%s3 + $0x78] sm:$0xff] %v115
  %152 = vst [vmem:[%s3 + $0x80] sm:$0xff] %v116
  %153 = vst [vmem:[%s3 + $0x88] sm:$0xff] %v117
  %154 = vst [vmem:[%s3 + $0x90] sm:$0xff] %v118
  %155 = vst [vmem:[%s3 + $0x98] sm:$0xff] %v119
  %156 = vst [vmem:[%s3 + $0xa0] sm:$0xff] %v120
  %157 = vst [vmem:[%s3 + $0xa8] sm:$0xff] %v121
  %158 = vst [vmem:[%s3 + $0xb0] sm:$0xff] %v122
  %159 = vst [vmem:[%s3 + $0xb8] sm:$0xff] %v123
  %160 = vst [vmem:[%s3 + $0xc0] sm:$0xff] %v124
  %161 = vst [vmem:[%s3 + $0xc8] sm:$0xff] %v125
  %162 = vst [vmem:[%s3 + $0xd0] sm:$0xff] %v126
  %163 = vst [vmem:[%s3 + $0xd8] sm:$0xff] %v127
  %164 = vst [vmem:[%s3 + $0xe0] sm:$0xff] %v128
  %165 = vst [vmem:[%s3 + $0xe8] sm:$0xff] %v129
  %166 = vst [vmem:[%s3 + $0xf0] sm:$0xff] %v130
  %167 = vst [vmem:[%s3 + $0xf8] sm:$0xff] %v131
  %168 = vst [vmem:[%s3 + $0x100] sm:$0xff] %v132
  %169 = vst [vmem:[%s3 + $0x108] sm:$0xff] %v133
  %170 = vst [vmem:[%s3 + $0x110] sm:$0xff] %v134
  %171 = vst [vmem:[%s3 + $0x118] sm:$0xff] %v135
  // Predicated region
  $region14: #{in_block_forward.3} parent=0 // pred_check
    _
  $region15: #{in_block_forward.3} parent=0 // pred_check_branch
    %173 = sbr.rel (0) target = $region17
  $region16: #{in_block_forward.3} parent=0 // pred_region
    _
  $region17: #{in_block_forward.3} parent=0 // pred_fallthru
    _
  // Predicated region
  $region18: #{in_block_forward.3} parent=0 // pred_check
    _
  $region19: #{in_block_forward.3} parent=0 // pred_check_branch
    %175 = sbr.rel (0) target = $region21
  $region20: #{in_block_forward.3} parent=0 // pred_region
    _
  $region21: #{in_block_forward.3} parent=0 // pred_fallthru
    _

// kernel: in_block_forward.2
$region0: #{in_block_forward.2}
  #allocation0 [shape = 'u32[]', space=smem, size = 0x4, offset = 0x4, fixed_abs, tag = 'smem constant byte address 0x4 - core index']
  #allocation1 [shape = 'u32[144,128]{1,0:T(1,128)}', space=vmem, size = 0x12000, scoped, tag = 'internal scratch']
  %s0 = inlined_call_operand.vmem [shape: f32[288,256], index: 0, kind: input, shape index: {}]
  %s1 = inlined_call_operand.vmem [shape: f32[256,128], index: 1, kind: input, shape index: {}]
  %s2 = inlined_call_operand.vmem [shape: f32[1,128], index: 2, kind: input, shape index: {}]
  %s3 = inlined_call_operand.vmem [shape: f32[288,128], index: 3, kind: output, shape index: {0}]
  %s4 = inlined_call_operand.vmem [shape: f32[1,128], index: 4, kind: output, shape index: {1}]
  %s5 = inlined_call_operand.vmem [shape: f32[1,128], index: 5, kind: output, shape index: {2}]
  %6 = xla_tuple %s3, %s4, %s5
  %s7 = sld [smem:[#allocation0]]
  $region42: #{in_block_forward.2} parent=0
    _
  %s9 = ssub.s32 1, %s7
  %s10 = scalar_select 0, %s9, %s7
  // Predicated region
  $region2: #{in_block_forward.2} parent=0 // pred_check
    _
  $region3: #{in_block_forward.2} parent=0 // pred_check_branch
    %12 = sbr.rel (0) target = $region5
  $region4: #{in_block_forward.2} parent=0 // pred_region
    _
  $region5: #{in_block_forward.2} parent=0 // pred_fallthru
    _
  // Predicated region
  $region6: #{in_block_forward.2} parent=0 // pred_check
    _
  $region7: #{in_block_forward.2} parent=0 // pred_check_branch
    %14 = sbr.rel (0) target = $region9
  $region8: #{in_block_forward.2} parent=0 // pred_region
    _
  $region9: #{in_block_forward.2} parent=0 // pred_fallthru
    _
  // Predicated region
  $region10: #{in_block_forward.2} parent=0 // pred_check
    _
  $region11: #{in_block_forward.2} parent=0 // pred_check_branch
    %16 = sbr.rel (0) target = $region13
  $region12: #{in_block_forward.2} parent=0 // pred_region
    _
  $region13: #{in_block_forward.2} parent=0 // pred_fallthru
    _
  %p17 = scmp.eq.s32.totalorder 0, 0
  // Predicated region
  $region14: #{in_block_forward.2} parent=0 // pred_check
    %p18 = pneg %p17
  $region15: #{in_block_forward.2} parent=0 // pred_check_branch
    %20 = sbr.rel (%p18) target = $region17
  $region16: #{in_block_forward.2} parent=0 // pred_region
    %21 = vst [vmem:[%s4] sm:$0x1] 0.0
    %22 = vst [vmem:[%s5] sm:$0x1] 0.0
  $region17: #{in_block_forward.2} parent=0 // pred_fallthru
    _
  %v23 = vld [vmem:[%s0] sm:$0xff]
  %v24 = vld [vmem:[%s0 + $0x8] sm:$0xff]
  %v25 = vld [vmem:[%s0 + $0x10] sm:$0xff]
  %v26 = vld [vmem:[%s0 + $0x18] sm:$0xff]
  %v27 = vld [vmem:[%s0 + $0x20] sm:$0xff]
  %v28 = vld [vmem:[%s0 + $0x28] sm:$0xff]
  %v29 = vld [vmem:[%s0 + $0x30] sm:$0xff]
  %v30 = vld [vmem:[%s0 + $0x38] sm:$0xff]
  %v31 = vld [vmem:[%s0 + $0x40] sm:$0xff]
  %v32 = vld [vmem:[%s0 + $0x48] sm:$0xff]
  %v33 = vld [vmem:[%s0 + $0x50] sm:$0xff]
  %v34 = vld [vmem:[%s0 + $0x58] sm:$0xff]
  %v35 = vld [vmem:[%s0 + $0x60] sm:$0xff]
  %v36 = vld [vmem:[%s0 + $0x68] sm:$0xff]
  %v37 = vld [vmem:[%s0 + $0x70] sm:$0xff]
  %v38 = vld [vmem:[%s0 + $0x78] sm:$0xff]
  %v39 = vld [vmem:[%s0 + $0x80] sm:$0xff]
  %v40 = vld [vmem:[%s0 + $0x88] sm:$0xff]
  %v41 = vld [vmem:[%s0 + $0x90] sm:$0xff]
  %v42 = vld [vmem:[%s0 + $0x98] sm:$0xff]
  %v43 = vld [vmem:[%s0 + $0xa0] sm:$0xff]
  %v44 = vld [vmem:[%s0 + $0xa8] sm:$0xff]
  %v45 = vld [vmem:[%s0 + $0xb0] sm:$0xff]
  %v46 = vld [vmem:[%s0 + $0xb8] sm:$0xff]
  %v47 = vld [vmem:[%s0 + $0xc0] sm:$0xff]
  %v48 = vld [vmem:[%s0 + $0xc8] sm:$0xff]
  %v49 = vld [vmem:[%s0 + $0xd0] sm:$0xff]
  %v50 = vld [vmem:[%s0 + $0xd8] sm:$0xff]
  %v51 = vld [vmem:[%s0 + $0xe0] sm:$0xff]
  %v52 = vld [vmem:[%s0 + $0xe8] sm:$0xff]
  %v53 = vld [vmem:[%s0 + $0xf0] sm:$0xff]
  %v54 = vld [vmem:[%s0 + $0xf8] sm:$0xff]
  %v55 = vld [vmem:[%s0 + $0x100] sm:$0xff]
  %v56 = vld [vmem:[%s0 + $0x108] sm:$0xff]
  %v57 = vld [vmem:[%s0 + $0x110] sm:$0xff]
  %v58 = vld [vmem:[%s0 + $0x118] sm:$0xff]
  %v59 = vld [vmem:[%s0 + $0x120] sm:$0xff]
  %v60 = vld [vmem:[%s0 + $0x128] sm:$0xff]
  %v61 = vld [vmem:[%s0 + $0x130] sm:$0xff]
  %v62 = vld [vmem:[%s0 + $0x138] sm:$0xff]
  %v63 = vld [vmem:[%s0 + $0x140] sm:$0xff]
  %v64 = vld [vmem:[%s0 + $0x148] sm:$0xff]
  %v65 = vld [vmem:[%s0 + $0x150] sm:$0xff]
  %v66 = vld [vmem:[%s0 + $0x158] sm:$0xff]
  %v67 = vld [vmem:[%s0 + $0x160] sm:$0xff]
  %v68 = vld [vmem:[%s0 + $0x168] sm:$0xff]
  %v69 = vld [vmem:[%s0 + $0x170] sm:$0xff]
  %v70 = vld [vmem:[%s0 + $0x178] sm:$0xff]
  %v71 = vld [vmem:[%s0 + $0x180] sm:$0xff]
  %v72 = vld [vmem:[%s0 + $0x188] sm:$0xff]
  %v73 = vld [vmem:[%s0 + $0x190] sm:$0xff]
  %v74 = vld [vmem:[%s0 + $0x198] sm:$0xff]
  %v75 = vld [vmem:[%s0 + $0x1a0] sm:$0xff]
  %v76 = vld [vmem:[%s0 + $0x1a8] sm:$0xff]
  %v77 = vld [vmem:[%s0 + $0x1b0] sm:$0xff]
  %v78 = vld [vmem:[%s0 + $0x1b8] sm:$0xff]
  %v79 = vld [vmem:[%s0 + $0x1c0] sm:$0xff]
  %v80 = vld [vmem:[%s0 + $0x1c8] sm:$0xff]
  %v81 = vld [vmem:[%s0 + $0x1d0] sm:$0xff]
  %v82 = vld [vmem:[%s0 + $0x1d8] sm:$0xff]
  %v83 = vld [vmem:[%s0 + $0x1e0] sm:$0xff]
  %v84 = vld [vmem:[%s0 + $0x1e8] sm:$0xff]
  %v85 = vld [vmem:[%s0 + $0x1f0] sm:$0xff]
  %v86 = vld [vmem:[%s0 + $0x1f8] sm:$0xff]
  %v87 = vld [vmem:[%s0 + $0x200] sm:$0xff]
  %v88 = vld [vmem:[%s0 + $0x208] sm:$0xff]
  %v89 = vld [vmem:[%s0 + $0x210] sm:$0xff]
  %v90 = vld [vmem:[%s0 + $0x218] sm:$0xff]
  %v91 = vld [vmem:[%s0 + $0x220] sm:$0xff]
  %v92 = vld [vmem:[%s0 + $0x228] sm:$0xff]
  %v93 = vld [vmem:[%s0 + $0x230] sm:$0xff]
  %v94 = vld [vmem:[%s0 + $0x238] sm:$0xff]
  %v95 = vld [vmem:[%s1] sm:$0xff]
  %v96 = vld [vmem:[%s1 + $0x8] sm:$0xff]
  %v97 = vld [vmem:[%s1 + $0x10] sm:$0xff]
  %v98 = vld [vmem:[%s1 + $0x18] sm:$0xff]
  %v99 = vld [vmem:[%s1 + $0x20] sm:$0xff]
  %v100 = vld [vmem:[%s1 + $0x28] sm:$0xff]
  %v101 = vld [vmem:[%s1 + $0x30] sm:$0xff]
  %v102 = vld [vmem:[%s1 + $0x38] sm:$0xff]
  %v103 = vld [vmem:[%s1 + $0x40] sm:$0xff]
  %v104 = vld [vmem:[%s1 + $0x48] sm:$0xff]
  %v105 = vld [vmem:[%s1 + $0x50] sm:$0xff]
  %v106 = vld [vmem:[%s1 + $0x58] sm:$0xff]
  %v107 = vld [vmem:[%s1 + $0x60] sm:$0xff]
  %v108 = vld [vmem:[%s1 + $0x68] sm:$0xff]
  %v109 = vld [vmem:[%s1 + $0x70] sm:$0xff]
  %v110 = vld [vmem:[%s1 + $0x78] sm:$0xff]
  %v111 = vld [vmem:[%s1 + $0x80] sm:$0xff]
  %v112 = vld [vmem:[%s1 + $0x88] sm:$0xff]
  %v113 = vld [vmem:[%s1 + $0x90] sm:$0xff]
  %v114 = vld [vmem:[%s1 + $0x98] sm:$0xff]
  %v115 = vld [vmem:[%s1 + $0xa0] sm:$0xff]
  %v116 = vld [vmem:[%s1 + $0xa8] sm:$0xff]
  %v117 = vld [vmem:[%s1 + $0xb0] sm:$0xff]
  %v118 = vld [vmem:[%s1 + $0xb8] sm:$0xff]
  %v119 = vld [vmem:[%s1 + $0xc0] sm:$0xff]
  %v120 = vld [vmem:[%s1 + $0xc8] sm:$0xff]
  %v121 = vld [vmem:[%s1 + $0xd0] sm:$0xff]
  %v122 = vld [vmem:[%s1 + $0xd8] sm:$0xff]
  %v123 = vld [vmem:[%s1 + $0xe0] sm:$0xff]
  %v124 = vld [vmem:[%s1 + $0xe8] sm:$0xff]
  %v125 = vld [vmem:[%s1 + $0xf0] sm:$0xff]
  %v126 = vld [vmem:[%s1 + $0xf8] sm:$0xff]
  %v127 = vld [vmem:[%s2] sm:$0x1]
  %v129 = vlaneseq
  %v130 = vshrl.u32 %v129, 7
  %v131 = vsub.s32 0, %v130
  %v132 = vrot.slane %v127, %v131
  %134 = vmatprep.subr.mxu0 0.0
  %135 = vmatpush1.msra.mxu0 %v110
  %136 = vmatprep.subr.mxu0 0.0
  %137 = vmatpush1.msra.mxu0 %v109
  %138 = vmatprep.subr.mxu0 0.0
  %139 = vmatpush1.msra.mxu0 %v108
  %140 = vmatprep.subr.mxu0 0.0
  %141 = vmatpush1.msra.mxu0 %v107
  %142 = vmatprep.subr.mxu0 0.0
  %143 = vmatpush1.msra.mxu0 %v106
  %144 = vmatprep.subr.mxu0 0.0
  %145 = vmatpush1.msra.mxu0 %v105
  %146 = vmatprep.subr.mxu0 0.0
  %147 = vmatpush1.msra.mxu0 %v104
  %148 = vmatprep.subr.mxu0 0.0
  %149 = vmatpush1.msra.mxu0 %v103
  %150 = vmatprep.subr.mxu0 0.0
  %151 = vmatpush1.msra.mxu0 %v102
  %152 = vmatprep.subr.mxu0 0.0
  %153 = vmatpush1.msra.mxu0 %v101
  %154 = vmatprep.subr.mxu0 0.0
  %155 = vmatpush1.msra.mxu0 %v100
  %156 = vmatprep.subr.mxu0 0.0
  %157 = vmatpush1.msra.mxu0 %v99
  %158 = vmatprep.subr.mxu0 0.0
  %159 = vmatpush1.msra.mxu0 %v98
  %160 = vmatprep.subr.mxu0 0.0
  %161 = vmatpush1.msra.mxu0 %v97
  %162 = vmatprep.subr.mxu0 0.0
  %163 = vmatpush1.msra.mxu0 %v96
  %164 = vmatprep.subr.mxu0 0.0
  %165 = vmatpush1.msra.mxu0 %v95
  %166 = vmatprep.subr.mxu0 0.0
  %167 = vmatpush2.msra.mxu0 %v126
  %168 = vmatprep.subr.mxu0 0.0
  %169 = vmatpush2.msra.mxu0 %v125
  %170 = vmatprep.subr.mxu0 0.0
  %171 = vmatpush2.msra.mxu0 %v124
  %172 = vmatprep.subr.mxu0 0.0
  %173 = vmatpush2.msra.mxu0 %v123
  %174 = vmatprep.subr.mxu0 0.0
  %175 = vmatpush2.msra.mxu0 %v122
  %176 = vmatprep.subr.mxu0 0.0
  %177 = vmatpush2.msra.mxu0 %v121
  %178 = vmatprep.subr.mxu0 0.0
  %179 = vmatpush2.msra.mxu0 %v120
  %180 = vmatprep.subr.mxu0 0.0
  %181 = vmatpush2.msra.mxu0 %v119
  %182 = vmatprep.subr.mxu0 0.0
  %183 = vmatpush2.msra.mxu0 %v118
  %184 = vmatprep.subr.mxu0 0.0
  %185 = vmatpush2.msra.mxu0 %v117
  %186 = vmatprep.subr.mxu0 0.0
  %187 = vmatpush2.msra.mxu0 %v116
  %188 = vmatprep.subr.mxu0 0.0
  %189 = vmatpush2.msra.mxu0 %v115
  %190 = vmatprep.subr.mxu0 0.0
  %191 = vmatpush2.msra.mxu0 %v114
  %192 = vmatprep.subr.mxu0 0.0
  %193 = vmatpush2.msra.mxu0 %v113
  %194 = vmatprep.subr.mxu0 0.0
  %195 = vmatpush2.msra.mxu0 %v112
  %196 = vmatprep.subr.mxu0 0.0
  %197 = vmatpush2.msra.mxu0 %v111
  %198 = vmatprep.mubr.f32.mxu0 %v24
  %199 = vmatmul.mubr.f32.gmra.mxu0 %v23
  %v200 = vpop.f32.mrf.mxu0
  %v201 = vadd.f32 %v132, %v200
  %v202 = vpop.f32.mrf.mxu0
  %203 = vmatprep.mubr.f32.mxu0 %v26
  %204 = vmatmul.mubr.f32.gmra.mxu0 %v25
  %v205 = vpop.f32.mrf.mxu0
  %v206 = vadd.f32 %v132, %v205
  %v207 = vpop.f32.mrf.mxu0
  %208 = vmatprep.mubr.f32.mxu0 %v28
  %209 = vmatmul.mubr.f32.gmra.mxu0 %v27
  %v210 = vpop.f32.mrf.mxu0
  %v211 = vadd.f32 %v132, %v210
  %v212 = vpop.f32.mrf.mxu0
  %213 = vmatprep.mubr.f32.mxu0 %v30
  %214 = vmatmul.mubr.f32.gmra.mxu0 %v29
  %v215 = vpop.f32.mrf.mxu0
  %v216 = vadd.f32 %v132, %v215
  %v217 = vpop.f32.mrf.mxu0
  %218 = vmatprep.mubr.f32.mxu0 %v32
  %219 = vmatmul.mubr.f32.gmra.mxu0 %v31
  %v220 = vpop.f32.mrf.mxu0
  %v221 = vadd.f32 %v132, %v220
  %v222 = vpop.f32.mrf.mxu0
  %223 = vmatprep.mubr.f32.mxu0 %v34
  %224 = vmatmul.mubr.f32.gmra.mxu0 %v33
  %v225 = vpop.f32.mrf.mxu0
  %v226 = vadd.f32 %v132, %v225
  %v227 = vpop.f32.mrf.mxu0
  %228 = vmatprep.mubr.f32.mxu0 %v36
  %229 = vmatmul.mubr.f32.gmra.mxu0 %v35
  %v230 = vpop.f32.mrf.mxu0
  %v231 = vadd.f32 %v132, %v230
  %v232 = vpop.f32.mrf.mxu0
  %233 = vmatprep.mubr.f32.mxu0 %v38
  %234 = vmatmul.mubr.f32.gmra.mxu0 %v37
  %v235 = vpop.f32.mrf.mxu0
  %v236 = vadd.f32 %v132, %v235
  %v237 = vpop.f32.mrf.mxu0
  %238 = vmatprep.mubr.f32.mxu0 %v40
  %239 = vmatmul.mubr.f32.gmra.mxu0 %v39
  %v240 = vpop.f32.mrf.mxu0
  %v241 = vadd.f32 %v132, %v240
  %v242 = vpop.f32.mrf.mxu0
  %243 = vmatprep.mubr.f32.mxu0 %v42
  %244 = vmatmul.mubr.f32.gmra.mxu0 %v41
  %v245 = vpop.f32.mrf.mxu0
  %v246 = vadd.f32 %v132, %v245
  %v247 = vpop.f32.mrf.mxu0
  %248 = vmatprep.mubr.f32.mxu0 %v44
  %249 = vmatmul.mubr.f32.gmra.mxu0 %v43
  %v250 = vpop.f32.mrf.mxu0
  %v251 = vadd.f32 %v132, %v250
  %v252 = vpop.f32.mrf.mxu0
  %253 = vmatprep.mubr.f32.mxu0 %v46
  %254 = vmatmul.mubr.f32.gmra.mxu0 %v45
  %v255 = vpop.f32.mrf.mxu0
  %v256 = vadd.f32 %v132, %v255
  %v257 = vpop.f32.mrf.mxu0
  %258 = vmatprep.mubr.f32.mxu0 %v48
  %259 = vmatmul.mubr.f32.gmra.mxu0 %v47
  %v260 = vpop.f32.mrf.mxu0
  %v261 = vadd.f32 %v132, %v260
  %v262 = vpop.f32.mrf.mxu0
  %263 = vmatprep.mubr.f32.mxu0 %v50
  %264 = vmatmul.mubr.f32.gmra.mxu0 %v49
  %v265 = vpop.f32.mrf.mxu0
  %v266 = vadd.f32 %v132, %v265
  %v267 = vpop.f32.mrf.mxu0
  %268 = vmatprep.mubr.f32.mxu0 %v52
  %269 = vmatmul.mubr.f32.gmra.mxu0 %v51
  %v270 = vpop.f32.mrf.mxu0
  %v271 = vadd.f32 %v132, %v270
  %v272 = vpop.f32.mrf.mxu0
  %273 = vmatprep.mubr.f32.mxu0 %v54
  %274 = vmatmul.mubr.f32.gmra.mxu0 %v53
  %v275 = vpop.f32.mrf.mxu0
  %v276 = vadd.f32 %v132, %v275
  %v277 = vpop.f32.mrf.mxu0
  %278 = vmatprep.mubr.f32.mxu0 %v56
  %279 = vmatmul.mubr.f32.gmra.mxu0 %v55
  %v280 = vpop.f32.mrf.mxu0
  %v281 = vadd.f32 %v132, %v280
  %v282 = vpop.f32.mrf.mxu0
  %283 = vmatprep.mubr.f32.mxu0 %v58
  %284 = vmatmul.mubr.f32.gmra.mxu0 %v57
  %v285 = vpop.f32.mrf.mxu0
  %v286 = vadd.f32 %v132, %v285
  %v287 = vpop.f32.mrf.mxu0
  %288 = vmatprep.mubr.f32.mxu0 %v60
  %289 = vmatmul.mubr.f32.gmra.mxu0 %v59
  %v290 = vpop.f32.mrf.mxu0
  %v291 = vadd.f32 %v132, %v290
  %v292 = vpop.f32.mrf.mxu0
  %293 = vmatprep.mubr.f32.mxu0 %v62
  %294 = vmatmul.mubr.f32.gmra.mxu0 %v61
  %v295 = vpop.f32.mrf.mxu0
  %v296 = vadd.f32 %v132, %v295
  %v297 = vpop.f32.mrf.mxu0
  %298 = vmatprep.mubr.f32.mxu0 %v64
  %299 = vmatmul.mubr.f32.gmra.mxu0 %v63
  %v300 = vpop.f32.mrf.mxu0
  %v301 = vadd.f32 %v132, %v300
  %v302 = vpop.f32.mrf.mxu0
  %303 = vmatprep.mubr.f32.mxu0 %v66
  %304 = vmatmul.mubr.f32.gmra.mxu0 %v65
  %v305 = vpop.f32.mrf.mxu0
  %v306 = vadd.f32 %v132, %v305
  %v307 = vpop.f32.mrf.mxu0
  %308 = vmatprep.mubr.f32.mxu0 %v68
  %309 = vmatmul.mubr.f32.gmra.mxu0 %v67
  %v310 = vpop.f32.mrf.mxu0
  %v311 = vadd.f32 %v132, %v310
  %v312 = vpop.f32.mrf.mxu0
  %313 = vmatprep.mubr.f32.mxu0 %v70
  %314 = vmatmul.mubr.f32.gmra.mxu0 %v69
  %v315 = vpop.f32.mrf.mxu0
  %v316 = vadd.f32 %v132, %v315
  %v317 = vpop.f32.mrf.mxu0
  %318 = vmatprep.mubr.f32.mxu0 %v72
  %319 = vmatmul.mubr.f32.gmra.mxu0 %v71
  %v320 = vpop.f32.mrf.mxu0
  %v321 = vadd.f32 %v132, %v320
  %v322 = vpop.f32.mrf.mxu0
  %323 = vmatprep.mubr.f32.mxu0 %v74
  %324 = vmatmul.mubr.f32.gmra.mxu0 %v73
  %v325 = vpop.f32.mrf.mxu0
  %v326 = vadd.f32 %v132, %v325
  %v327 = vpop.f32.mrf.mxu0
  %328 = vmatprep.mubr.f32.mxu0 %v76
  %329 = vmatmul.mubr.f32.gmra.mxu0 %v75
  %v330 = vpop.f32.mrf.mxu0
  %v331 = vadd.f32 %v132, %v330
  %v332 = vpop.f32.mrf.mxu0
  %333 = vmatprep.mubr.f32.mxu0 %v78
  %334 = vmatmul.mubr.f32.gmra.mxu0 %v77
  %v335 = vpop.f32.mrf.mxu0
  %v336 = vadd.f32 %v132, %v335
  %v337 = vpop.f32.mrf.mxu0
  %338 = vmatprep.mubr.f32.mxu0 %v80
  %339 = vmatmul.mubr.f32.gmra.mxu0 %v79
  %v340 = vpop.f32.mrf.mxu0
  %v341 = vadd.f32 %v132, %v340
  %v342 = vpop.f32.mrf.mxu0
  %343 = vmatprep.mubr.f32.mxu0 %v82
  %344 = vmatmul.mubr.f32.gmra.mxu0 %v81
  %v345 = vpop.f32.mrf.mxu0
  %v346 = vadd.f32 %v132, %v345
  %v347 = vpop.f32.mrf.mxu0
  %348 = vmatprep.mubr.f32.mxu0 %v84
  %349 = vmatmul.mubr.f32.gmra.mxu0 %v83
  %v350 = vpop.f32.mrf.mxu0
  %v351 = vadd.f32 %v132, %v350
  %v352 = vpop.f32.mrf.mxu0
  %353 = vmatprep.mubr.f32.mxu0 %v86
  %354 = vmatmul.mubr.f32.gmra.mxu0 %v85
  %v355 = vpop.f32.mrf.mxu0
  %v356 = vadd.f32 %v132, %v355
  %v357 = vpop.f32.mrf.mxu0
  %358 = vmatprep.mubr.f32.mxu0 %v88
  %359 = vmatmul.mubr.f32.gmra.mxu0 %v87
  %v360 = vpop.f32.mrf.mxu0
  %v361 = vadd.f32 %v132, %v360
  %v362 = vpop.f32.mrf.mxu0
  %363 = vmatprep.mubr.f32.mxu0 %v90
  %364 = vmatmul.mubr.f32.gmra.mxu0 %v89
  %v365 = vpop.f32.mrf.mxu0
  %v366 = vadd.f32 %v132, %v365
  %v367 = vpop.f32.mrf.mxu0
  %368 = vmatprep.mubr.f32.mxu0 %v92
  %369 = vmatmul.mubr.f32.gmra.mxu0 %v91
  %v370 = vpop.f32.mrf.mxu0
  %v371 = vadd.f32 %v132, %v370
  %v372 = vpop.f32.mrf.mxu0
  %373 = vmatprep.mubr.f32.mxu0 %v94
  %374 = vmatmul.mubr.f32.gmra.mxu0 %v93
  %v375 = vpop.f32.mrf.mxu0
  %v376 = vadd.f32 %v132, %v375
  %v377 = vpop.f32.mrf.mxu0
  %378 = vdwg.mxu0
  %vm379 = vcmp.gt.f32.partialorder %v201, 0.0
  %vm380 = vcmp.gt.f32.partialorder %v206, 0.0
  %vm381 = vcmp.gt.f32.partialorder %v211, 0.0
  %vm382 = vcmp.gt.f32.partialorder %v216, 0.0
  %vm383 = vcmp.gt.f32.partialorder %v221, 0.0
  %vm384 = vcmp.gt.f32.partialorder %v226, 0.0
  %vm385 = vcmp.gt.f32.partialorder %v231, 0.0
  %vm386 = vcmp.gt.f32.partialorder %v236, 0.0
  %vm387 = vcmp.gt.f32.partialorder %v241, 0.0
  %vm388 = vcmp.gt.f32.partialorder %v246, 0.0
  %vm389 = vcmp.gt.f32.partialorder %v251, 0.0
  %vm390 = vcmp.gt.f32.partialorder %v256, 0.0
  %vm391 = vcmp.gt.f32.partialorder %v261, 0.0
  %vm392 = vcmp.gt.f32.partialorder %v266, 0.0
  %vm393 = vcmp.gt.f32.partialorder %v271, 0.0
  %vm394 = vcmp.gt.f32.partialorder %v276, 0.0
  %vm395 = vcmp.gt.f32.partialorder %v281, 0.0
  %vm396 = vcmp.gt.f32.partialorder %v286, 0.0
  %vm397 = vcmp.gt.f32.partialorder %v291, 0.0
  %vm398 = vcmp.gt.f32.partialorder %v296, 0.0
  %vm399 = vcmp.gt.f32.partialorder %v301, 0.0
  %vm400 = vcmp.gt.f32.partialorder %v306, 0.0
  %vm401 = vcmp.gt.f32.partialorder %v311, 0.0
  %vm402 = vcmp.gt.f32.partialorder %v316, 0.0
  %vm403 = vcmp.gt.f32.partialorder %v321, 0.0
  %vm404 = vcmp.gt.f32.partialorder %v326, 0.0
  %vm405 = vcmp.gt.f32.partialorder %v331, 0.0
  %vm406 = vcmp.gt.f32.partialorder %v336, 0.0
  %vm407 = vcmp.gt.f32.partialorder %v341, 0.0
  %vm408 = vcmp.gt.f32.partialorder %v346, 0.0
  %vm409 = vcmp.gt.f32.partialorder %v351, 0.0
  %vm410 = vcmp.gt.f32.partialorder %v356, 0.0
  %vm411 = vcmp.gt.f32.partialorder %v361, 0.0
  %vm412 = vcmp.gt.f32.partialorder %v366, 0.0
  %vm413 = vcmp.gt.f32.partialorder %v371, 0.0
  %vm414 = vcmp.gt.f32.partialorder %v376, 0.0
  %v415 = vmul.f32 %v201, 0.01
  %v416 = vmul.f32 %v206, 0.01
  %v417 = vmul.f32 %v211, 0.01
  %v418 = vmul.f32 %v216, 0.01
  %v419 = vmul.f32 %v221, 0.01
  %v420 = vmul.f32 %v226, 0.01
  %v421 = vmul.f32 %v231, 0.01
  %v422 = vmul.f32 %v236, 0.01
  %v423 = vmul.f32 %v241, 0.01
  %v424 = vmul.f32 %v246, 0.01
  %v425 = vmul.f32 %v251, 0.01
  %v426 = vmul.f32 %v256, 0.01
  %v427 = vmul.f32 %v261, 0.01
  %v428 = vmul.f32 %v266, 0.01
  %v429 = vmul.f32 %v271, 0.01
  %v430 = vmul.f32 %v276, 0.01
  %v431 = vmul.f32 %v281, 0.01
  %v432 = vmul.f32 %v286, 0.01
  %v433 = vmul.f32 %v291, 0.01
  %v434 = vmul.f32 %v296, 0.01
  %v435 = vmul.f32 %v301, 0.01
  %v436 = vmul.f32 %v306, 0.01
  %v437 = vmul.f32 %v311, 0.01
  %v438 = vmul.f32 %v316, 0.01
  %v439 = vmul.f32 %v321, 0.01
  %v440 = vmul.f32 %v326, 0.01
  %v441 = vmul.f32 %v331, 0.01
  %v442 = vmul.f32 %v336, 0.01
  %v443 = vmul.f32 %v341, 0.01
  %v444 = vmul.f32 %v346, 0.01
  %v445 = vmul.f32 %v351, 0.01
  %v446 = vmul.f32 %v356, 0.01
  %v447 = vmul.f32 %v361, 0.01
  %v448 = vmul.f32 %v366, 0.01
  %v449 = vmul.f32 %v371, 0.01
  %v450 = vmul.f32 %v376, 0.01
  %v451 = vsel %vm379, %v201, %v415
  %v452 = vsel %vm380, %v206, %v416
  %v453 = vsel %vm381, %v211, %v417
  %v454 = vsel %vm382, %v216, %v418
  %v455 = vsel %vm383, %v221, %v419
  %v456 = vsel %vm384, %v226, %v420
  %v457 = vsel %vm385, %v231, %v421
  %v458 = vsel %vm386, %v236, %v422
  %v459 = vsel %vm387, %v241, %v423
  %v460 = vsel %vm388, %v246, %v424
  %v461 = vsel %vm389, %v251, %v425
  %v462 = vsel %vm390, %v256, %v426
  %v463 = vsel %vm391, %v261, %v427
  %v464 = vsel %vm392, %v266, %v428
  %v465 = vsel %vm393, %v271, %v429
  %v466 = vsel %vm394, %v276, %v430
  %v467 = vsel %vm395, %v281, %v431
  %v468 = vsel %vm396, %v286, %v432
  %v469 = vsel %vm397, %v291, %v433
  %v470 = vsel %vm398, %v296, %v434
  %v471 = vsel %vm399, %v301, %v435
  %v472 = vsel %vm400, %v306, %v436
  %v473 = vsel %vm401, %v311, %v437
  %v474 = vsel %vm402, %v316, %v438
  %v475 = vsel %vm403, %v321, %v439
  %v476 = vsel %vm404, %v326, %v440
  %v477 = vsel %vm405, %v331, %v441
  %v478 = vsel %vm406, %v336, %v442
  %v479 = vsel %vm407, %v341, %v443
  %v480 = vsel %vm408, %v346, %v444
  %v481 = vsel %vm409, %v351, %v445
  %v482 = vsel %vm410, %v356, %v446
  %v483 = vsel %vm411, %v361, %v447
  %v484 = vsel %vm412, %v366, %v448
  %v485 = vsel %vm413, %v371, %v449
  %v486 = vsel %vm414, %v376, %v450
  %487 = vst [vmem:[%s3] sm:$0xff] %v451
  %488 = vst [vmem:[%s3 + $0x8] sm:$0xff] %v452
  %489 = vst [vmem:[%s3 + $0x10] sm:$0xff] %v453
  %490 = vst [vmem:[%s3 + $0x18] sm:$0xff] %v454
  %491 = vst [vmem:[%s3 + $0x20] sm:$0xff] %v455
  %492 = vst [vmem:[%s3 + $0x28] sm:$0xff] %v456
  %493 = vst [vmem:[%s3 + $0x30] sm:$0xff] %v457
  %494 = vst [vmem:[%s3 + $0x38] sm:$0xff] %v458
  %495 = vst [vmem:[%s3 + $0x40] sm:$0xff] %v459
  %496 = vst [vmem:[%s3 + $0x48] sm:$0xff] %v460
  %497 = vst [vmem:[%s3 + $0x50] sm:$0xff] %v461
  %498 = vst [vmem:[%s3 + $0x58] sm:$0xff] %v462
  %499 = vst [vmem:[%s3 + $0x60] sm:$0xff] %v463
  %500 = vst [vmem:[%s3 + $0x68] sm:$0xff] %v464
  %501 = vst [vmem:[%s3 + $0x70] sm:$0xff] %v465
  %502 = vst [vmem:[%s3 + $0x78] sm:$0xff] %v466
  %503 = vst [vmem:[%s3 + $0x80] sm:$0xff] %v467
  %504 = vst [vmem:[%s3 + $0x88] sm:$0xff] %v468
  %505 = vst [vmem:[%s3 + $0x90] sm:$0xff] %v469
  %506 = vst [vmem:[%s3 + $0x98] sm:$0xff] %v470
  %507 = vst [vmem:[%s3 + $0xa0] sm:$0xff] %v471
  %508 = vst [vmem:[%s3 + $0xa8] sm:$0xff] %v472
  %509 = vst [vmem:[%s3 + $0xb0] sm:$0xff] %v473
  %510 = vst [vmem:[%s3 + $0xb8] sm:$0xff] %v474
  %511 = vst [vmem:[%s3 + $0xc0] sm:$0xff] %v475
  %512 = vst [vmem:[%s3 + $0xc8] sm:$0xff] %v476
  %513 = vst [vmem:[%s3 + $0xd0] sm:$0xff] %v477
  %514 = vst [vmem:[%s3 + $0xd8] sm:$0xff] %v478
  %515 = vst [vmem:[%s3 + $0xe0] sm:$0xff] %v479
  %516 = vst [vmem:[%s3 + $0xe8] sm:$0xff] %v480
  %517 = vst [vmem:[%s3 + $0xf0] sm:$0xff] %v481
  %518 = vst [vmem:[%s3 + $0xf8] sm:$0xff] %v482
  %519 = vst [vmem:[%s3 + $0x100] sm:$0xff] %v483
  %520 = vst [vmem:[%s3 + $0x108] sm:$0xff] %v484
  %521 = vst [vmem:[%s3 + $0x110] sm:$0xff] %v485
  %522 = vst [vmem:[%s3 + $0x118] sm:$0xff] %v486
  %v523 = vlaneseq
  %v524 = vshrl.u32 %v523, 7
  %v525 = vadd.s32 %v524, 8
  %v526 = vadd.s32 %v524, 16
  %v527 = vadd.s32 %v524, 24
  %v528 = vadd.s32 %v524, 32
  %v529 = vadd.s32 %v524, 40
  %v530 = vadd.s32 %v524, 48
  %v531 = vadd.s32 %v524, 56
  %v532 = vadd.s32 %v524, 64
  %v533 = vadd.s32 %v524, 72
  %v534 = vadd.s32 %v524, 80
  %v535 = vadd.s32 %v524, 88
  %v536 = vadd.s32 %v524, 96
  %v537 = vadd.s32 %v524, 104
  %v538 = vadd.s32 %v524, 112
  %v539 = vadd.s32 %v524, 120
  %v540 = vadd.s32 %v524, 128
  %v541 = vadd.s32 %v524, 136
  %v542 = vadd.s32 %v524, 144
  %v543 = vadd.s32 %v524, 152
  %v544 = vadd.s32 %v524, 160
  %v545 = vadd.s32 %v524, 168
  %v546 = vadd.s32 %v524, 176
  %v547 = vadd.s32 %v524, 184
  %v548 = vadd.s32 %v524, 192
  %v549 = vadd.s32 %v524, 200
  %v550 = vadd.s32 %v524, 208
  %v551 = vadd.s32 %v524, 216
  %v552 = vadd.s32 %v524, 224
  %v553 = vadd.s32 %v524, 232
  %v554 = vadd.s32 %v524, 240
  %v555 = vadd.s32 %v524, 248
  %v556 = vadd.s32 %v524, 256
  %v557 = vadd.s32 %v524, 264
  %v558 = vadd.s32 %v524, 272
  %v559 = vadd.s32 %v524, 280
  %s560 = smul.u32 0, 288
  %v561 = vstv %s560
  %v562 = vadd.s32 %v524, %v561
  %v563 = vadd.s32 %v525, %v561
  %v564 = vadd.s32 %v526, %v561
  %v565 = vadd.s32 %v527, %v561
  %v566 = vadd.s32 %v528, %v561
  %v567 = vadd.s32 %v529, %v561
  %v568 = vadd.s32 %v530, %v561
  %v569 = vadd.s32 %v531, %v561
  %v570 = vadd.s32 %v532, %v561
  %v571 = vadd.s32 %v533, %v561
  %v572 = vadd.s32 %v534, %v561
  %v573 = vadd.s32 %v535, %v561
  %v574 = vadd.s32 %v536, %v561
  %v575 = vadd.s32 %v537, %v561
  %v576 = vadd.s32 %v538, %v561
  %v577 = vadd.s32 %v539, %v561
  %v578 = vadd.s32 %v540, %v561
  %v579 = vadd.s32 %v541, %v561
  %v580 = vadd.s32 %v542, %v561
  %v581 = vadd.s32 %v543, %v561
  %v582 = vadd.s32 %v544, %v561
  %v583 = vadd.s32 %v545, %v561
  %v584 = vadd.s32 %v546, %v561
  %v585 = vadd.s32 %v547, %v561
  %v586 = vadd.s32 %v548, %v561
  %v587 = vadd.s32 %v549, %v561
  %v588 = vadd.s32 %v550, %v561
  %v589 = vadd.s32 %v551, %v561
  %v590 = vadd.s32 %v552, %v561
  %v591 = vadd.s32 %v553, %v561
  %v592 = vadd.s32 %v554, %v561
  %v593 = vadd.s32 %v555, %v561
  %v594 = vadd.s32 %v556, %v561
  %v595 = vadd.s32 %v557, %v561
  %v596 = vadd.s32 %v558, %v561
  %v597 = vadd.s32 %v559, %v561
  %vm598 = vcmp.lt.s32.totalorder %v562, 288
  %vm599 = vcmp.lt.s32.totalorder %v563, 288
  %vm600 = vcmp.lt.s32.totalorder %v564, 288
  %vm601 = vcmp.lt.s32.totalorder %v565, 288
  %vm602 = vcmp.lt.s32.totalorder %v566, 288
  %vm603 = vcmp.lt.s32.totalorder %v567, 288
  %vm604 = vcmp.lt.s32.totalorder %v568, 288
  %vm605 = vcmp.lt.s32.totalorder %v569, 288
  %vm606 = vcmp.lt.s32.totalorder %v570, 288
  %vm607 = vcmp.lt.s32.totalorder %v571, 288
  %vm608 = vcmp.lt.s32.totalorder %v572, 288
  %vm609 = vcmp.lt.s32.totalorder %v573, 288
  %vm610 = vcmp.lt.s32.totalorder %v574, 288
  %vm611 = vcmp.lt.s32.totalorder %v575, 288
  %vm612 = vcmp.lt.s32.totalorder %v576, 288
  %vm613 = vcmp.lt.s32.totalorder %v577, 288
  %vm614 = vcmp.lt.s32.totalorder %v578, 288
  %vm615 = vcmp.lt.s32.totalorder %v579, 288
  %vm616 = vcmp.lt.s32.totalorder %v580, 288
  %vm617 = vcmp.lt.s32.totalorder %v581, 288
  %vm618 = vcmp.lt.s32.totalorder %v582, 288
  %vm619 = vcmp.lt.s32.totalorder %v583, 288
  %vm620 = vcmp.lt.s32.totalorder %v584, 288
  %vm621 = vcmp.lt.s32.totalorder %v585, 288
  %vm622 = vcmp.lt.s32.totalorder %v586, 288
  %vm623 = vcmp.lt.s32.totalorder %v587, 288
  %vm624 = vcmp.lt.s32.totalorder %v588, 288
  %vm625 = vcmp.lt.s32.totalorder %v589, 288
  %vm626 = vcmp.lt.s32.totalorder %v590, 288
  %vm627 = vcmp.lt.s32.totalorder %v591, 288
  %vm628 = vcmp.lt.s32.totalorder %v592, 288
  %vm629 = vcmp.lt.s32.totalorder %v593, 288
  %vm630 = vcmp.lt.s32.totalorder %v594, 288
  %vm631 = vcmp.lt.s32.totalorder %v595, 288
  %vm632 = vcmp.lt.s32.totalorder %v596, 288
  %vm633 = vcmp.lt.s32.totalorder %v597, 288
  %v634 = vsel %vm598, %v451, 0.0
  %v635 = vsel %vm599, %v452, 0.0
  %v636 = vsel %vm600, %v453, 0.0
  %v637 = vsel %vm601, %v454, 0.0
  %v638 = vsel %vm602, %v455, 0.0
  %v639 = vsel %vm603, %v456, 0.0
  %v640 = vsel %vm604, %v457, 0.0
  %v641 = vsel %vm605, %v458, 0.0
  %v642 = vsel %vm606, %v459, 0.0
  %v643 = vsel %vm607, %v460, 0.0
  %v644 = vsel %vm608, %v461, 0.0
  %v645 = vsel %vm609, %v462, 0.0
  %v646 = vsel %vm610, %v463, 0.0
  %v647 = vsel %vm611, %v464, 0.0
  %v648 = vsel %vm612, %v465, 0.0
  %v649 = vsel %vm613, %v466, 0.0
  %v650 = vsel %vm614, %v467, 0.0
  %v651 = vsel %vm615, %v468, 0.0
  %v652 = vsel %vm616, %v469, 0.0
  %v653 = vsel %vm617, %v470, 0.0
  %v654 = vsel %vm618, %v471, 0.0
  %v655 = vsel %vm619, %v472, 0.0
  %v656 = vsel %vm620, %v473, 0.0
  %v657 = vsel %vm621, %v474, 0.0
  %v658 = vsel %vm622, %v475, 0.0
  %v659 = vsel %vm623, %v476, 0.0
  %v660 = vsel %vm624, %v477, 0.0
  %v661 = vsel %vm625, %v478, 0.0
  %v662 = vsel %vm626, %v479, 0.0
  %v663 = vsel %vm627, %v480, 0.0
  %v664 = vsel %vm628, %v481, 0.0
  %v665 = vsel %vm629, %v482, 0.0
  %v666 = vsel %vm630, %v483, 0.0
  %v667 = vsel %vm631, %v484, 0.0
  %v668 = vsel %vm632, %v485, 0.0
  %v669 = vsel %vm633, %v486, 0.0
  %v670 = vld [vmem:[%s4] sm:$0x1]
  %v671 = vadd.f32 %v634, %v635
  %v672 = vadd.f32 %v671, %v636
  %v673 = vadd.f32 %v672, %v637
  %v674 = vadd.f32 %v673, %v638
  %v675 = vadd.f32 %v674, %v639
  %v676 = vadd.f32 %v675, %v640
  %v677 = vadd.f32 %v676, %v641
  %v678 = vadd.f32 %v677, %v642
  %v679 = vadd.f32 %v678, %v643
  %v680 = vadd.f32 %v679, %v644
  %v681 = vadd.f32 %v680, %v645
  %v682 = vadd.f32 %v681, %v646
  %v683 = vadd.f32 %v682, %v647
  %v684 = vadd.f32 %v683, %v648
  %v685 = vadd.f32 %v684, %v649
  %v686 = vadd.f32 %v685, %v650
  %v687 = vadd.f32 %v686, %v651
  %v688 = vadd.f32 %v687, %v652
  %v689 = vadd.f32 %v688, %v653
  %v690 = vadd.f32 %v689, %v654
  %v691 = vadd.f32 %v690, %v655
  %v692 = vadd.f32 %v691, %v656
  %v693 = vadd.f32 %v692, %v657
  %v694 = vadd.f32 %v693, %v658
  %v695 = vadd.f32 %v694, %v659
  %v696 = vadd.f32 %v695, %v660
  %v697 = vadd.f32 %v696, %v661
  %v698 = vadd.f32 %v697, %v662
  %v699 = vadd.f32 %v698, %v663
  %v700 = vadd.f32 %v699, %v664
  %v701 = vadd.f32 %v700, %v665
  %v702 = vadd.f32 %v701, %v666
  %v703 = vadd.f32 %v702, %v667
  %v704 = vadd.f32 %v703, %v668
  %v705 = vadd.f32 %v704, %v669
  %v706 = vrot.slane %v705, 4
  %v707 = vadd.f32 %v705, %v706
  %v708 = vrot.slane %v707, 2
  %v709 = vadd.f32 %v707, %v708
  %v710 = vrot.slane %v709, 1
  %v711 = vadd.f32 %v709, %v710
  %v712 = vadd.f32 %v670, %v711
  %713 = vst [vmem:[%s4] sm:$0x1] %v712
  %v714 = vld [vmem:[%s5] sm:$0x1]
  %v715 = vmul.f32 %v634, %v634
  %v716 = vmul.f32 %v635, %v635
  %v717 = vmul.f32 %v636, %v636
  %v718 = vmul.f32 %v637, %v637
  %v719 = vmul.f32 %v638, %v638
  %v720 = vmul.f32 %v639, %v639
  %v721 = vmul.f32 %v640, %v640
  %v722 = vmul.f32 %v641, %v641
  %v723 = vmul.f32 %v642, %v642
  %v724 = vmul.f32 %v643, %v643
  %v725 = vmul.f32 %v644, %v644
  %v726 = vmul.f32 %v645, %v645
  %v727 = vmul.f32 %v646, %v646
  %v728 = vmul.f32 %v647, %v647
  %v729 = vmul.f32 %v648, %v648
  %v730 = vmul.f32 %v649, %v649
  %v731 = vmul.f32 %v650, %v650
  %v732 = vmul.f32 %v651, %v651
  %v733 = vmul.f32 %v652, %v652
  %v734 = vmul.f32 %v653, %v653
  %v735 = vmul.f32 %v654, %v654
  %v736 = vmul.f32 %v655, %v655
  %v737 = vmul.f32 %v656, %v656
  %v738 = vmul.f32 %v657, %v657
  %v739 = vmul.f32 %v658, %v658
  %v740 = vmul.f32 %v659, %v659
  %v741 = vmul.f32 %v660, %v660
  %v742 = vmul.f32 %v661, %v661
  %v743 = vmul.f32 %v662, %v662
  %v744 = vmul.f32 %v663, %v663
  %v745 = vmul.f32 %v664, %v664
  %v746 = vmul.f32 %v665, %v665
  %v747 = vmul.f32 %v666, %v666
  %v748 = vmul.f32 %v667, %v667
  %v749 = vmul.f32 %v668, %v668
  %v750 = vmul.f32 %v669, %v669
  %v751 = vadd.f32 %v715, %v716
  %v752 = vadd.f32 %v751, %v717
  %v753 = vadd.f32 %v752, %v718
  %v754 = vadd.f32 %v753, %v719
  %v755 = vadd.f32 %v754, %v720
  %v756 = vadd.f32 %v755, %v721
  %v757 = vadd.f32 %v756, %v722
  %v758 = vadd.f32 %v757, %v723
  %v759 = vadd.f32 %v758, %v724
  %v760 = vadd.f32 %v759, %v725
  %v761 = vadd.f32 %v760, %v726
  %v762 = vadd.f32 %v761, %v727
  %v763 = vadd.f32 %v762, %v728
  %v764 = vadd.f32 %v763, %v729
  %v765 = vadd.f32 %v764, %v730
  %v766 = vadd.f32 %v765, %v731
  %v767 = vadd.f32 %v766, %v732
  %v768 = vadd.f32 %v767, %v733
  %v769 = vadd.f32 %v768, %v734
  %v770 = vadd.f32 %v769, %v735
  %v771 = vadd.f32 %v770, %v736
  %v772 = vadd.f32 %v771, %v737
  %v773 = vadd.f32 %v772, %v738
  %v774 = vadd.f32 %v773, %v739
  %v775 = vadd.f32 %v774, %v740
  %v776 = vadd.f32 %v775, %v741
  %v777 = vadd.f32 %v776, %v742
  %v778 = vadd.f32 %v777, %v743
  %v779 = vadd.f32 %v778, %v744
  %v780 = vadd.f32 %v779, %v745
  %v781 = vadd.f32 %v780, %v746
  %v782 = vadd.f32 %v781, %v747
  %v783 = vadd.f32 %v782, %v748
  %v784 = vadd.f32 %v783, %v749
  %v785 = vadd.f32 %v784, %v750
  %v786 = vrot.slane %v785, 4
  %v787 = vadd.f32 %v785, %v786
  %v788 = vrot.slane %v787, 2
  %v789 = vadd.f32 %v787, %v788
  %v790 = vrot.slane %v789, 1
  %v791 = vadd.f32 %v789, %v790
  %v792 = vadd.f32 %v714, %v791
  %793 = vst [vmem:[%s5] sm:$0x1] %v792
  // Predicated region
  $region18: #{in_block_forward.2} parent=0 // pred_check
    _
  $region19: #{in_block_forward.2} parent=0 // pred_check_branch
    %795 = sbr.rel (0) target = $region21
  $region20: #{in_block_forward.2} parent=0 // pred_region
    _
  $region21: #{in_block_forward.2} parent=0 // pred_fallthru
    _
  // Predicated region
  $region22: #{in_block_forward.2} parent=0 // pred_check
    _
  $region23: #{in_block_forward.2} parent=0 // pred_check_branch
    %797 = sbr.rel (0) target = $region25
  $region24: #{in_block_forward.2} parent=0 // pred_region
    _
  $region25: #{in_block_forward.2} parent=0 // pred_fallthru
    _
  // Predicated region
  $region26: #{in_block_forward.2} parent=0 // pred_check
    _
  $region27: #{in_block_forward.2} parent=0 // pred_check_branch
    %799 = sbr.rel (0) target = $region29
  $region28: #{in_block_forward.2} parent=0 // pred_region
    _
  $region29: #{in_block_forward.2} parent=0 // pred_fallthru
    _
  // Predicated region
  $region30: #{in_block_forward.2} parent=0 // pred_check
    _
  $region31: #{in_block_forward.2} parent=0 // pred_check_branch
    %801 = sbr.rel (0) target = $region33
  $region32: #{in_block_forward.2} parent=0 // pred_region
    _
  $region33: #{in_block_forward.2} parent=0 // pred_fallthru
    _
  // Predicated region
  $region34: #{in_block_forward.2} parent=0 // pred_check
    _
  $region35: #{in_block_forward.2} parent=0 // pred_check_branch
    %803 = sbr.rel (0) target = $region37
  $region36: #{in_block_forward.2} parent=0 // pred_region
    _
  $region37: #{in_block_forward.2} parent=0 // pred_fallthru
    _
  // Predicated region
  $region38: #{in_block_forward.2} parent=0 // pred_check
    _
  $region39: #{in_block_forward.2} parent=0 // pred_check_branch
    %805 = sbr.rel (0) target = $region41
  $region40: #{in_block_forward.2} parent=0 // pred_region
    _
  $region41: #{in_block_forward.2} parent=0 // pred_fallthru
    _

</llo_original>
